<compile_context>
chip_gen: v5e
topology: v5e:2x2
jax: 0.10.0
libtpu: 0.0.40
codegen_flags: <defaults>
</compile_context>

<pallas_src>
import jax
import jax.numpy as jnp
from jax.experimental import pallas as pl
from jax.experimental.pallas import tpu as pltpu

VOCAB = 91
VOCAB_PAD = 128          # pad vocab to a full lane width (padded rows are zero)
EMB_DIM = 8
OUT_DIM = EMB_DIM + 2    # 8 embedding dims + onset + duration
ROWS_MAX = 512           # row-tile cap keeps the (128, ROWS) one-hot ~256 KiB


def _round_up(x, m):
    return (x + m - 1) // m * m


def _embed_concat_kernel(notes_ref, onsets_ref, durations_ref, table_t_ref, out_ref):
    # notes_ref:     (1, ROWS)        int32  note ids for this row tile
    # onsets_ref:    (1, ROWS)        f32
    # durations_ref: (1, ROWS)        f32
    # table_t_ref:   (EMB_DIM, 128)   f32    transposed, zero-padded embedding table
    # out_ref:       (OUT_DIM, ROWS)  f32    feature-major, lane-dense output tile
    rows = notes_ref.shape[1]
    ids = notes_ref[...]                                              # (1, ROWS)

    # One-hot (transposed) built against a compile-time K = 128.
    iota_v = jax.lax.broadcasted_iota(jnp.int32, (VOCAB_PAD, rows), 0)
    onehot_t = (iota_v == ids).astype(jnp.float32)                    # (128, ROWS)

    # Embedding gather as a lane-dense MXU contraction: (8,128) @ (128,ROWS).
    emb_t = jnp.dot(table_t_ref[...], onehot_t,
                    preferred_element_type=jnp.float32)               # (8, ROWS)

    # Write pieces straight into disjoint row slices (no concatenate).
    out_ref[0:EMB_DIM, :] = emb_t
    out_ref[EMB_DIM:EMB_DIM + 1, :] = onsets_ref[...]
    out_ref[EMB_DIM + 1:EMB_DIM + 2, :] = durations_ref[...]


def embedding_simple_forward(notes, onsets, durations, x_lengths, emb_table):
    """Pallas version of embeddingSimple.forward.

    notes:     (B, T, 1) integer note ids in [0, 91)
    onsets:    (B, T, 1) float32
    durations: (B, T, 1) float32
    x_lengths: unused by the forward pass (kept for signature parity)
    emb_table: (91, 8) float32 embedding weights
    returns:   (B, T, 10) float32
    """
    del x_lengths  # not used in the PyTorch forward
    B, T, _ = notes.shape
    n = B * T

    # Row tile: multiple of 128 (lane-dense), capped so the one-hot stays small.
    rows = min(ROWS_MAX, _round_up(n, 128))
    n_pad = _round_up(n, rows)
    n_blocks = n_pad // rows

    def prep(x, dtype):
        flat = x.reshape(n).astype(dtype)
        flat = jnp.pad(flat, (0, n_pad - n))          # pad rows: id 0 / value 0.0
        return flat.reshape(1, n_pad)

    notes_b = prep(notes, jnp.int32)
    onsets_b = prep(onsets, jnp.float32)
    durs_b = prep(durations, jnp.float32)

    # Zero-pad the table to 128 rows (pad rows MUST be zero) and pre-transpose.
    table_pad = jnp.pad(emb_table.astype(jnp.float32),
                        ((0, VOCAB_PAD - VOCAB), (0, 0)))              # (128, 8)
    table_t = table_pad.T                                              # (8, 128)

    out_fm = pl.pallas_call(
        _embed_concat_kernel,
        out_shape=jax.ShapeDtypeStruct((OUT_DIM, n_pad), jnp.float32),
        grid_spec=pltpu.PrefetchScalarGridSpec(
            num_scalar_prefetch=0,
            grid=(n_blocks,),
            in_specs=[
                pl.BlockSpec((1, rows), lambda i: (0, i)),
                pl.BlockSpec((1, rows), lambda i: (0, i)),
                pl.BlockSpec((1, rows), lambda i: (0, i)),
                pl.BlockSpec((EMB_DIM, VOCAB_PAD), lambda i: (0, 0)),
            ],
            out_specs=pl.BlockSpec((OUT_DIM, rows), lambda i: (0, i)),
        ),
        compiler_params=pltpu.CompilerParams(
            dimension_semantics=("parallel",),
        ),
    )(notes_b, onsets_b, durs_b, table_t)

    # Feature-major (10, N_pad) -> (B, T, 10); drop padded rows.
    return out_fm[:, :n].T.reshape(B, T, OUT_DIM)
    # TODO(synk): out-of-range note ids silently produce a zero embedding row
    # (PyTorch nn.Embedding would raise); clamp upstream if that matters.


if __name__ == "__main__":
    key = jax.random.PRNGKey(0)
    k_emb, k_notes, k_on, k_dur = jax.random.split(key, 4)

    B, T = 2, 8
    # Deterministic parameter init (nn.Embedding(91, 8) weight).
    emb_table = jax.random.normal(k_emb, (VOCAB, EMB_DIM), dtype=jnp.float32)

    notes = jax.random.randint(k_notes, (B, T, 1), 0, VOCAB, dtype=jnp.int32)
    onsets = jax.random.normal(k_on, (B, T, 1), dtype=jnp.float32)
    durations = jax.random.normal(k_dur, (B, T, 1), dtype=jnp.float32)
    x_lengths = jnp.full((B,), T, dtype=jnp.int32)

    out = embedding_simple_forward(notes, onsets, durations, x_lengths, emb_table)
    out = jax.block_until_ready(out)

    # Cross-check against a plain-JAX reference of the same semantics.
    ref = jnp.concatenate(
        [emb_table[notes[..., 0]], onsets, durations], axis=2
    )
    assert out.shape == (B, T, OUT_DIM), out.shape
    assert jnp.allclose(out, ref, atol=1e-5), "mismatch vs reference"

    print("KERNEL_OK")
</pallas_src>

<mosaic_0001>
module attributes {stable_mosaic.version = 11 : i64} {
  func.func @_embed_concat_kernel(%arg0: i32, %arg1: memref<1x128xi32, #tpu.memory_space<vmem>>, %arg2: memref<1x128xf32, #tpu.memory_space<vmem>>, %arg3: memref<1x128xf32, #tpu.memory_space<vmem>>, %arg4: memref<8x128xf32, #tpu.memory_space<vmem>>, %arg5: memref<10x128xf32, #tpu.memory_space<vmem>>) attributes {dimension_semantics = [#tpu.dimension_semantics<parallel>], iteration_bounds = array<i64: 1>, scalar_prefetch = 0 : i64, scratch_operands = 0 : i64, tpu.core_type = #tpu.core_type<tc>, window_params = [{transform_indices = @transform_0, window_bounds = array<i64: 1, 128>}, {transform_indices = @transform_1, window_bounds = array<i64: 1, 128>}, {transform_indices = @transform_2, window_bounds = array<i64: 1, 128>}, {pipeline_mode = #tpu.pipeline_mode<synchronous>, transform_indices = @transform_3, window_bounds = array<i64: 8, 128>}, {transform_indices = @transform_4, window_bounds = array<i64: 10, 128>}]} {
    %c0 = arith.constant 0 : index
    %c0_0 = arith.constant 0 : index
    %0 = vector.load %arg1[%c0, %c0_0] : memref<1x128xi32, #tpu.memory_space<vmem>>, vector<1x128xi32>
    %1 = tpu.iota {dimensions = array<i32: 0>} : vector<128x128xi32>
    %2 = vector.broadcast %0 : vector<1x128xi32> to vector<128x128xi32>
    %3 = arith.cmpi eq, %1, %2 : vector<128x128xi32>
    %4 = arith.extui %3 : vector<128x128xi1> to vector<128x128xi32>
    %5 = arith.sitofp %4 : vector<128x128xi32> to vector<128x128xf32>
    %c0_1 = arith.constant 0 : index
    %c0_2 = arith.constant 0 : index
    %6 = vector.load %arg4[%c0_1, %c0_2] : memref<8x128xf32, #tpu.memory_space<vmem>>, vector<8x128xf32>
    %cst = arith.constant dense<0.000000e+00> : vector<8x128xf32>
    %7 = tpu.matmul %6, %5, %cst {dimension_numbers = #tpu.dot_dimension_numbers<[1], [0], [0], [1], [0, 0, 1, 1], [], []>} : vector<8x128xf32>, vector<128x128xf32>, vector<8x128xf32> -> vector<8x128xf32>
    %c0_3 = arith.constant 0 : index
    %c0_4 = arith.constant 0 : index
    %8 = vector.load %arg5[%c0_3, %c0_4] : memref<10x128xf32, #tpu.memory_space<vmem>>, vector<8x128xf32>
    tpu.vector_store %arg5[%c0_3, %c0_4], %7 {strides = array<i32>} : memref<10x128xf32, #tpu.memory_space<vmem>>, vector<8x128xf32>,
    %c0_5 = arith.constant 0 : index
    %c0_6 = arith.constant 0 : index
    %9 = vector.load %arg2[%c0_5, %c0_6] : memref<1x128xf32, #tpu.memory_space<vmem>>, vector<1x128xf32>
    %c8 = arith.constant 8 : index
    %c0_7 = arith.constant 0 : index
    %10 = vector.load %arg5[%c8, %c0_7] : memref<10x128xf32, #tpu.memory_space<vmem>>, vector<1x128xf32>
    tpu.vector_store %arg5[%c8, %c0_7], %9 {strides = array<i32>} : memref<10x128xf32, #tpu.memory_space<vmem>>, vector<1x128xf32>,
    %c0_8 = arith.constant 0 : index
    %c0_9 = arith.constant 0 : index
    %11 = vector.load %arg3[%c0_8, %c0_9] : memref<1x128xf32, #tpu.memory_space<vmem>>, vector<1x128xf32>
    %c9 = arith.constant 9 : index
    %c0_10 = arith.constant 0 : index
    %12 = vector.load %arg5[%c9, %c0_10] : memref<10x128xf32, #tpu.memory_space<vmem>>, vector<1x128xf32>
    tpu.vector_store %arg5[%c9, %c0_10], %11 {strides = array<i32>} : memref<10x128xf32, #tpu.memory_space<vmem>>, vector<1x128xf32>,
    return
  }
  func.func @transform_0(%arg0: i32) -> (i32, i32) {
    %c0_i32 = arith.constant 0 : i32
    %c0_i32_0 = arith.constant 0 : i32
    return %c0_i32, %arg0 : i32, i32
  }
  func.func @transform_1(%arg0: i32) -> (i32, i32) {
    %c0_i32 = arith.constant 0 : i32
    %c0_i32_0 = arith.constant 0 : i32
    return %c0_i32, %arg0 : i32, i32
  }
  func.func @transform_2(%arg0: i32) -> (i32, i32) {
    %c0_i32 = arith.constant 0 : i32
    %c0_i32_0 = arith.constant 0 : i32
    return %c0_i32, %arg0 : i32, i32
  }
  func.func @transform_3(%arg0: i32) -> (i32, i32) {
    %c0_i32 = arith.constant 0 : i32
    %c0_i32_0 = arith.constant 0 : i32
    %c0_i32_1 = arith.constant 0 : i32
    return %c0_i32, %c0_i32_0 : i32, i32
  }
  func.func @transform_4(%arg0: i32) -> (i32, i32) {
    %c0_i32 = arith.constant 0 : i32
    %c0_i32_0 = arith.constant 0 : i32
    return %c0_i32, %arg0 : i32, i32
  }
}

</mosaic_0001>

<llo_original>
// kernel: tpu_custom_call.1
$region0: #{tpu_custom_call.1}
  #allocation0 [shape = 'u32[]', space=smem, size = 0x4, offset = 0x4, fixed_abs, tag = 'smem constant byte address 0x4 - core index']
  #allocation1 [shape = 'u32[72,128]{1,0:T(1,128)}', space=vmem, size = 0x9000, scoped, tag = 'internal scratch']
  %s0 = inlined_call_operand.hbm [shape: s32[1,128], index: 0, kind: input, shape index: {}]
  %s1 = inlined_call_operand.hbm [shape: f32[1,128], index: 1, kind: input, shape index: {}]
  %s2 = inlined_call_operand.vmem [shape: f32[1,128], index: 2, kind: input, shape index: {}]
  %s3 = inlined_call_operand.hbm [shape: f32[8,128], index: 3, kind: input, shape index: {}]
  %s4 = inlined_call_operand.hbm [shape: f32[10,128], index: 4, kind: output, shape index: {}]
  %s5 = sld [smem:[#allocation0]]
  $region38: #{tpu_custom_call.1} parent=0
    _
  %s7 = ssub.s32 1, %s5
  %s8 = scalar_select 0, %s7, %s5
  $region1: #{tpu_custom_call.1} parent=0
    #allocation2 [shape = 'u8[512]{0}', space=vmem, size = 0x400, scoped, tag = 'input window, operand 0, single buffered']
    #allocation3 [shape = 's32[1]{0}', space=sflag, size = 0x4, scoped, tag = 'scoped memory for tpu_custom_call.1']
    #allocation4 [shape = 's32[1]{0}', space=sflag, size = 0x4, scoped, tag = 'scoped memory for tpu_custom_call.1']
    #allocation5 [shape = 'u8[512]{0}', space=vmem, size = 0x400, scoped, tag = 'input window, operand 1, single buffered']
    #allocation6 [shape = 's32[1]{0}', space=sflag, size = 0x4, scoped, tag = 'scoped memory for tpu_custom_call.1']
    #allocation7 [shape = 'u8[4096]{0}', space=vmem, size = 0x1000, scoped, tag = 'input window, operand 3, single buffered']
    #allocation8 [shape = 'u8[8192]{0}', space=vmem, size = 0x2000, scoped, tag = 'output window, operand 0, single buffered']
    %9 = vsyncpa [#allocation3], 0
    %10 = vsyncpa [#allocation6], 0
    %11 = vsyncpa [#allocation4], 0
    // Predicated region
    $region2: #{tpu_custom_call.1} parent=1 // pred_check
      _
    $region3: #{tpu_custom_call.1} parent=1 // pred_check_branch
      %13 = sbr.rel (0) target = $region5
    $region4: #{tpu_custom_call.1} parent=1 // pred_region
      %15 = vsyncadd [#allocation3], 0
      %s17 = sshll.u32 %s0, 4
      %s18 = int_to_ptr.hbm [resolvable:$true] %s17
      %s19 = sshll.u32 [#allocation2], 4
      %s20 = int_to_ptr.vmem [resolvable:$true] %s19
      %22 = dma.hbm_to_vmem [thread:$0]  %s18, 16, %s20, [#allocation3]
    $region5: #{tpu_custom_call.1} parent=1 // pred_fallthru
      _
    // Predicated region
    $region6: #{tpu_custom_call.1} parent=1 // pred_check
      _
    $region7: #{tpu_custom_call.1} parent=1 // pred_check_branch
      %24 = sbr.rel (0) target = $region9
    $region8: #{tpu_custom_call.1} parent=1 // pred_region
      %26 = vsyncadd [#allocation6], 0
      %s28 = sshll.u32 %s1, 4
      %s29 = int_to_ptr.hbm [resolvable:$true] %s28
      %s30 = sshll.u32 [#allocation5], 4
      %s31 = int_to_ptr.vmem [resolvable:$true] %s30
      %33 = dma.hbm_to_vmem [thread:$0]  %s29, 16, %s31, [#allocation6]
    $region9: #{tpu_custom_call.1} parent=1 // pred_fallthru
      _
    // Predicated region
    $region10: #{tpu_custom_call.1} parent=1 // pred_check
      _
    $region11: #{tpu_custom_call.1} parent=1 // pred_check_branch
      %35 = sbr.rel (0) target = $region13
    $region12: #{tpu_custom_call.1} parent=1 // pred_region
      _
    $region13: #{tpu_custom_call.1} parent=1 // pred_fallthru
      _
    // Predicated region
    $region14: #{tpu_custom_call.1} parent=1 // pred_check
      _
    $region15: #{tpu_custom_call.1} parent=1 // pred_check_branch
      %37 = sbr.rel (0) target = $region17
    $region16: #{tpu_custom_call.1} parent=1 // pred_region
      %39 = vsyncadd [#allocation6], 0
      %s41 = sshll.u32 %s3, 4
      %s42 = int_to_ptr.hbm [resolvable:$true] %s41
      %s43 = sshll.u32 [#allocation7], 4
      %s44 = int_to_ptr.vmem [resolvable:$true] %s43
      %46 = dma.hbm_to_vmem [thread:$0]  %s42, 128, %s44, [#allocation6]
    $region17: #{tpu_custom_call.1} parent=1 // pred_fallthru
      _
    // Predicated region
    $region18: #{tpu_custom_call.1} parent=1 // pred_check
      _
    $region19: #{tpu_custom_call.1} parent=1 // pred_check_branch
      %48 = sbr.rel (0) target = $region21
    $region20: #{tpu_custom_call.1} parent=1 // pred_region
      %50 = dma.done [#allocation3], 16
    $region21: #{tpu_custom_call.1} parent=1 // pred_fallthru
      _
    // Predicated region
    $region22: #{tpu_custom_call.1} parent=1 // pred_check
      _
    $region23: #{tpu_custom_call.1} parent=1 // pred_check_branch
      %52 = sbr.rel (0) target = $region25
    $region24: #{tpu_custom_call.1} parent=1 // pred_region
      %54 = dma.done [#allocation6], 16
    $region25: #{tpu_custom_call.1} parent=1 // pred_fallthru
      _
    // Predicated region
    $region26: #{tpu_custom_call.1} parent=1 // pred_check
      _
    $region27: #{tpu_custom_call.1} parent=1 // pred_check_branch
      %56 = sbr.rel (0) target = $region29
    $region28: #{tpu_custom_call.1} parent=1 // pred_region
      %58 = dma.done [#allocation6], 128
    $region29: #{tpu_custom_call.1} parent=1 // pred_fallthru
      _
    %v59 = vld [vmem:[#allocation2] sm:$0x1]
    %v60 = vlaneseq
    %v61 = vshrl.u32 %v60, 7
    %v62 = vadd.s32 %v61, 8
    %v63 = vadd.s32 %v61, 16
    %v64 = vadd.s32 %v61, 24
    %v65 = vadd.s32 %v61, 32
    %v66 = vadd.s32 %v61, 40
    %v67 = vadd.s32 %v61, 48
    %v68 = vadd.s32 %v61, 56
    %v69 = vadd.s32 %v61, 64
    %v70 = vadd.s32 %v61, 72
    %v71 = vadd.s32 %v61, 80
    %v72 = vadd.s32 %v61, 88
    %v73 = vadd.s32 %v61, 96
    %v74 = vadd.s32 %v61, 104
    %v75 = vadd.s32 %v61, 112
    %v76 = vadd.s32 %v61, 120
    %v77 = vperm.slane %v59, 0
    %vm78 = vcmp.eq.s32.totalorder %v61, %v77
    %vm79 = vcmp.eq.s32.totalorder %v62, %v77
    %vm80 = vcmp.eq.s32.totalorder %v63, %v77
    %vm81 = vcmp.eq.s32.totalorder %v64, %v77
    %vm82 = vcmp.eq.s32.totalorder %v65, %v77
    %vm83 = vcmp.eq.s32.totalorder %v66, %v77
    %vm84 = vcmp.eq.s32.totalorder %v67, %v77
    %vm85 = vcmp.eq.s32.totalorder %v68, %v77
    %vm86 = vcmp.eq.s32.totalorder %v69, %v77
    %vm87 = vcmp.eq.s32.totalorder %v70, %v77
    %vm88 = vcmp.eq.s32.totalorder %v71, %v77
    %vm89 = vcmp.eq.s32.totalorder %v72, %v77
    %vm90 = vcmp.eq.s32.totalorder %v73, %v77
    %vm91 = vcmp.eq.s32.totalorder %v74, %v77
    %vm92 = vcmp.eq.s32.totalorder %v75, %v77
    %vm93 = vcmp.eq.s32.totalorder %v76, %v77
    %v94 = vsel %vm78, 1, 0
    %v95 = vsel %vm79, 1, 0
    %v96 = vsel %vm80, 1, 0
    %v97 = vsel %vm81, 1, 0
    %v98 = vsel %vm82, 1, 0
    %v99 = vsel %vm83, 1, 0
    %v100 = vsel %vm84, 1, 0
    %v101 = vsel %vm85, 1, 0
    %v102 = vsel %vm86, 1, 0
    %v103 = vsel %vm87, 1, 0
    %v104 = vsel %vm88, 1, 0
    %v105 = vsel %vm89, 1, 0
    %v106 = vsel %vm90, 1, 0
    %v107 = vsel %vm91, 1, 0
    %v108 = vsel %vm92, 1, 0
    %v109 = vsel %vm93, 1, 0
    %v110 = vcvt.s32.f32 %v94
    %v111 = vcvt.s32.f32 %v95
    %v112 = vcvt.s32.f32 %v96
    %v113 = vcvt.s32.f32 %v97
    %v114 = vcvt.s32.f32 %v98
    %v115 = vcvt.s32.f32 %v99
    %v116 = vcvt.s32.f32 %v100
    %v117 = vcvt.s32.f32 %v101
    %v118 = vcvt.s32.f32 %v102
    %v119 = vcvt.s32.f32 %v103
    %v120 = vcvt.s32.f32 %v104
    %v121 = vcvt.s32.f32 %v105
    %v122 = vcvt.s32.f32 %v106
    %v123 = vcvt.s32.f32 %v107
    %v124 = vcvt.s32.f32 %v108
    %v125 = vcvt.s32.f32 %v109
    %v126 = vld [vmem:[#allocation7] sm:$0xff]
    %127 = vmatpush.msra.mxu0 %v125
    %128 = vmatpush.msra.mxu0 %v124
    %129 = vmatpush.msra.mxu0 %v123
    %130 = vmatpush.msra.mxu0 %v122
    %131 = vmatpush.msra.mxu0 %v121
    %132 = vmatpush.msra.mxu0 %v120
    %133 = vmatpush.msra.mxu0 %v119
    %134 = vmatpush.msra.mxu0 %v118
    %135 = vmatpush.msra.mxu0 %v117
    %136 = vmatpush.msra.mxu0 %v116
    %137 = vmatpush.msra.mxu0 %v115
    %138 = vmatpush.msra.mxu0 %v114
    %139 = vmatpush.msra.mxu0 %v113
    %140 = vmatpush.msra.mxu0 %v112
    %141 = vmatpush.msra.mxu0 %v111
    %142 = vmatpush.msra.mxu0 %v110
    %143 = vmatmul.f32.gmra.mxu0 %v126
    %v144 = vpop.f32.mrf.mxu0
    %v145 = vadd.f32 0.0, %v144
    %146 = vdwg.mxu0
    %147 = vst [vmem:[#allocation8] sm:$0xff] %v145
    %v148 = vld [vmem:[#allocation5] sm:$0x1]
    %149 = vst [vmem:[#allocation8 + $0x8] sm:$0x1] %v148
    %v150 = vld [vmem:[%s2] sm:$0x1]
    %151 = vst [vmem:[#allocation8 + $0x9] sm:$0x1] %v150
    // Predicated region
    $region30: #{tpu_custom_call.1} parent=1 // pred_check
      _
    $region31: #{tpu_custom_call.1} parent=1 // pred_check_branch
      %153 = sbr.rel (0) target = $region33
    $region32: #{tpu_custom_call.1} parent=1 // pred_region
      %155 = vsyncadd [#allocation4], 0
      %s156 = sshll.u32 [#allocation8], 4
      %s157 = int_to_ptr.vmem [resolvable:$true] %s156
      %s158 = sshll.u32 %s4, 4
      %s159 = int_to_ptr.hbm [resolvable:$true] %s158
      %164 = dma.vmem_to_hbm [thread:$0]  %s157, 256, %s159, [#allocation4], 128, 128, 8
    $region33: #{tpu_custom_call.1} parent=1 // pred_fallthru
      _
    // Predicated region
    $region34: #{tpu_custom_call.1} parent=1 // pred_check
      _
    $region35: #{tpu_custom_call.1} parent=1 // pred_check_branch
      %166 = sbr.rel (0) target = $region37
    $region36: #{tpu_custom_call.1} parent=1 // pred_region
      %168 = dma.done [#allocation4], 256
    $region37: #{tpu_custom_call.1} parent=1 // pred_fallthru
      _
    %169 = vsyncpa [#allocation3], 1
    %170 = vsyncpa [#allocation6], 1
    %171 = vsyncpa [#allocation4], 1

</llo_original>
